<compile_context>
chip_gen: v7x
topology: tpu7x:2x2x1
jax: 0.10.0
libtpu: 0.0.40
codegen_flags: <defaults>
</compile_context>

<pallas_src>
import jax
import jax.numpy as jnp
from jax.experimental import pallas as pl
from jax.experimental.pallas import tpu as pltpu


def _round_up(x, m):
    return (x + m - 1) // m * m


def _pad2(a, rows, cols):
    """Zero-pad a 2-D array up to (rows, cols); no-op (no copy) if already there."""
    r = rows - a.shape[0]
    c = cols - a.shape[1]
    if r == 0 and c == 0:
        return a
    return jnp.pad(a, ((0, r), (0, c)))


def critic_kernel(s_ref, a_ref, w1s_ref, w1a_ref, b1_ref,
                  w2_ref, b2_ref, w3_ref, b3_ref, out_ref):
    # fc1: concat(states, actions) @ W1 + b1 == states @ W1[:S] + actions @ W1[S:] + b1
    h1 = (jnp.dot(s_ref[...], w1s_ref[...], preferred_element_type=jnp.float32)
          + jnp.dot(a_ref[...], w1a_ref[...], preferred_element_type=jnp.float32)
          + b1_ref[...])
    h1 = jnp.maximum(h1, 0.0).astype(w2_ref.dtype)        # ReLU; back to MXU-native dtype

    h2 = jnp.dot(h1, w2_ref[...], preferred_element_type=jnp.float32) + b2_ref[...]
    h2 = jnp.maximum(h2, 0.0).astype(w3_ref.dtype)         # ReLU

    q = jnp.dot(h2, w3_ref[...], preferred_element_type=jnp.float32) + b3_ref[...]
    out_ref[...] = q.astype(out_ref.dtype)                 # raw Q (no activation)


@jax.jit
def critic_forward(states, actions, w1, b1, w2, b2, w3, b3):
    """Pallas Critic forward.  Weights are (in_dim, out_dim): y = x @ W + b."""
    B, S = states.shape
    A = actions.shape[1]
    in_dim = S + A
    hidden = w1.shape[1]
    out_dim = w3.shape[1]
    assert w1.shape[0] == in_dim and w2.shape == (hidden, hidden) and w3.shape[0] == hidden
    # TODO(synk): S == 0 or A == 0 (agent with empty state/action space) is not handled.

    out_dtype = states.dtype
    if B == 0:
        return jnp.zeros((0, out_dim), out_dtype)

    LANE, SUB = 128, 8
    hid_pad = _round_up(hidden, LANE)

    # Batch tiling: big tiles to amortize per-step overhead, but >= 2 grid steps
    # when possible so both v7x TensorCores get work on the "parallel" axis.
    B8 = max(_round_up(B, SUB), SUB)
    block_b = min(1024, max(SUB, _round_up(pl.cdiv(B8, 2), SUB)))
    B_pad = _round_up(B8, block_b)
    grid = (B_pad // block_b,)

    wdt = w1.dtype
    # Inputs stay at their real feature widths (no 128-lane padding of x).
    s_in = _pad2(states.astype(wdt), B_pad, S)
    a_in = _pad2(actions.astype(wdt), B_pad, A)

    # Split W1 by input source; pad hidden dim only if it is not lane-aligned.
    w1s = _pad2(w1[:S], S, hid_pad)
    w1a = _pad2(w1[S:], A, hid_pad)
    b1p = _pad2(b1.reshape(1, -1), 1, hid_pad)
    w2p = _pad2(w2, hid_pad, hid_pad)
    b2p = _pad2(b2.reshape(1, -1), 1, hid_pad)
    w3p = _pad2(w3, hid_pad, out_dim)
    b3p = b3.reshape(1, -1)

    rep = lambda shape: pl.BlockSpec(shape, lambda i: (0, 0))   # replicated every step

    itemsize = jnp.dtype(wdt).itemsize
    flops = 2 * B_pad * hid_pad * (S + A + hid_pad + out_dim)
    bytes_accessed = (
        (s_in.size + a_in.size + w1s.size + w1a.size + b1p.size
         + w2p.size + b2p.size + w3p.size + b3p.size) * itemsize
        + B_pad * out_dim * jnp.dtype(out_dtype).itemsize
    )

    out = pl.pallas_call(
        critic_kernel,
        out_shape=jax.ShapeDtypeStruct((B_pad, out_dim), out_dtype),
        grid_spec=pltpu.PrefetchScalarGridSpec(
            num_scalar_prefetch=0,
            grid=grid,
            in_specs=[
                pl.BlockSpec((block_b, S), lambda i: (i, 0)),    # states tile
                pl.BlockSpec((block_b, A), lambda i: (i, 0)),    # actions tile
                rep((S, hid_pad)),                               # W1[:S]
                rep((A, hid_pad)),                               # W1[S:]
                rep((1, hid_pad)),                               # b1
                rep((hid_pad, hid_pad)),                         # W2
                rep((1, hid_pad)),                               # b2
                rep((hid_pad, out_dim)),                         # W3 (true 1-wide head)
                rep((1, out_dim)),                               # b3
            ],
            out_specs=pl.BlockSpec((block_b, out_dim), lambda i: (i, 0)),
        ),
        compiler_params=pltpu.CompilerParams(
            dimension_semantics=("parallel",),   # batch axis shards across TCs (v7x)
        ),
        cost_estimate=pl.CostEstimate(
            flops=flops, transcendentals=0, bytes_accessed=bytes_accessed
        ),
    )(s_in, a_in, w1s, w1a, b1p, w2p, b2p, w3p, b3p)

    if B_pad != B:
        out = out[:B]
    return out


def init_critic_params(key, input_dim, hidden_dim, dtype=jnp.float32):
    """Deterministic synthetic init (PyTorch Linear default-like uniform)."""
    ks = jax.random.split(key, 6)

    def linear(kw, kb, fan_in, fan_out):
        bound = float(1.0 / (fan_in ** 0.5))
        w = jax.random.uniform(kw, (fan_in, fan_out), jnp.float32, -bound, bound)
        b = jax.random.uniform(kb, (1, fan_out), jnp.float32, -bound, bound)
        return w.astype(dtype), b.astype(dtype)

    w1, b1 = linear(ks[0], ks[1], input_dim, hidden_dim)
    w2, b2 = linear(ks[2], ks[3], hidden_dim, hidden_dim)
    w3, b3 = linear(ks[4], ks[5], hidden_dim, 1)   # single Q head
    return w1, b1, w2, b2, w3, b3


def _ref_forward(states, actions, w1, b1, w2, b2, w3, b3):
    """Pure-JAX f32 reference of the same math (concat -> relu -> relu -> linear)."""
    f32 = jnp.float32
    x = jnp.concatenate([states, actions], axis=-1).astype(f32)
    h = jnp.maximum(x @ w1.astype(f32) + b1.astype(f32), 0.0)
    h = jnp.maximum(h @ w2.astype(f32) + b2.astype(f32), 0.0)
    return h @ w3.astype(f32) + b3.astype(f32)


if __name__ == "__main__":
    # Small shapes consistent with the module: 2 agents, per-agent state 8 / action 2.
    num_agents = 2
    state_dims = [8, 8]
    action_dims = [2, 2]
    hidden_dim = 128
    batch = 8

    input_dim = sum(state_dims) + sum(action_dims)   # 20

    key = jax.random.PRNGKey(0)
    k_s, k_a, k_p = jax.random.split(key, 3)
    states = jax.random.normal(k_s, (batch, sum(state_dims)), dtype=jnp.float32)
    actions = jax.random.normal(k_a, (batch, sum(action_dims)), dtype=jnp.float32)

    # float32 path: numerically exact (zero padding provably contributes nothing).
    params32 = init_critic_params(k_p, input_dim, hidden_dim, dtype=jnp.float32)
    q32 = jax.block_until_ready(critic_forward(states, actions, *params32))
    ref32 = _ref_forward(states, actions, *params32)
    assert q32.shape == (batch, 1)
    assert jnp.allclose(q32, ref32, atol=1e-3, rtol=1e-3)

    # bf16 path (perf-recommended): bf16 MXU operands, f32 accumulation.
    params16 = [p.astype(jnp.bfloat16) for p in params32]
    q16 = jax.block_until_ready(critic_forward(states, actions, *params16))
    ref16 = _ref_forward(states, actions, *params16)
    assert q16.shape == (batch, 1)
    assert jnp.allclose(q16.astype(jnp.float32), ref16, atol=5e-2, rtol=5e-2)

    print("KERNEL_OK")
</pallas_src>

<mosaic_0001>
module attributes {stable_mosaic.version = 11 : i64} {
  func.func @critic_kernel(%arg0: i32, %arg1: memref<8x16xf32, #tpu.memory_space<vmem>>, %arg2: memref<8x4xf32, #tpu.memory_space<vmem>>, %arg3: memref<16x128xf32, #tpu.memory_space<vmem>>, %arg4: memref<4x128xf32, #tpu.memory_space<vmem>>, %arg5: memref<1x128xf32, #tpu.memory_space<vmem>>, %arg6: memref<128x128xf32, #tpu.memory_space<vmem>>, %arg7: memref<1x128xf32, #tpu.memory_space<vmem>>, %arg8: memref<128x1xf32, #tpu.memory_space<vmem>>, %arg9: memref<1x1xf32, #tpu.memory_space<vmem>>, %arg10: memref<8x1xf32, #tpu.memory_space<vmem>>) attributes {dimension_semantics = [#tpu.dimension_semantics<parallel>], iteration_bounds = array<i64: 1>, scalar_prefetch = 0 : i64, scratch_operands = 0 : i64, tpu.core_type = #tpu.core_type<tc>, window_params = [{transform_indices = @transform_0, window_bounds = array<i64: 8, 16>}, {transform_indices = @transform_1, window_bounds = array<i64: 8, 4>}, {pipeline_mode = #tpu.pipeline_mode<synchronous>, transform_indices = @transform_2, window_bounds = array<i64: 16, 128>}, {pipeline_mode = #tpu.pipeline_mode<synchronous>, transform_indices = @transform_3, window_bounds = array<i64: 4, 128>}, {pipeline_mode = #tpu.pipeline_mode<synchronous>, transform_indices = @transform_4, window_bounds = array<i64: 1, 128>}, {pipeline_mode = #tpu.pipeline_mode<synchronous>, transform_indices = @transform_5, window_bounds = array<i64: 128, 128>}, {pipeline_mode = #tpu.pipeline_mode<synchronous>, transform_indices = @transform_6, window_bounds = array<i64: 1, 128>}, {pipeline_mode = #tpu.pipeline_mode<synchronous>, transform_indices = @transform_7, window_bounds = array<i64: 128, 1>}, {pipeline_mode = #tpu.pipeline_mode<synchronous>, transform_indices = @transform_8, window_bounds = array<i64: 1, 1>}, {transform_indices = @transform_9, window_bounds = array<i64: 8, 1>}]} {
    %c0 = arith.constant 0 : index
    %c0_0 = arith.constant 0 : index
    %0 = vector.load %arg1[%c0, %c0_0] : memref<8x16xf32, #tpu.memory_space<vmem>>, vector<8x16xf32>
    %c0_1 = arith.constant 0 : index
    %c0_2 = arith.constant 0 : index
    %1 = vector.load %arg3[%c0_1, %c0_2] : memref<16x128xf32, #tpu.memory_space<vmem>>, vector<16x128xf32>
    %cst = arith.constant dense<0.000000e+00> : vector<8x128xf32>
    %2 = tpu.matmul %0, %1, %cst {dimension_numbers = #tpu.dot_dimension_numbers<[1], [0], [0], [1], [0, 0, 1, 1], [], []>} : vector<8x16xf32>, vector<16x128xf32>, vector<8x128xf32> -> vector<8x128xf32>
    %c0_3 = arith.constant 0 : index
    %c0_4 = arith.constant 0 : index
    %3 = vector.load %arg2[%c0_3, %c0_4] : memref<8x4xf32, #tpu.memory_space<vmem>>, vector<8x4xf32>
    %c0_5 = arith.constant 0 : index
    %c0_6 = arith.constant 0 : index
    %4 = vector.load %arg4[%c0_5, %c0_6] : memref<4x128xf32, #tpu.memory_space<vmem>>, vector<4x128xf32>
    %cst_7 = arith.constant dense<0.000000e+00> : vector<8x128xf32>
    %5 = tpu.matmul %3, %4, %cst_7 {dimension_numbers = #tpu.dot_dimension_numbers<[1], [0], [0], [1], [0, 0, 1, 1], [], []>} : vector<8x4xf32>, vector<4x128xf32>, vector<8x128xf32> -> vector<8x128xf32>
    %6 = arith.addf %2, %5 : vector<8x128xf32>
    %c0_8 = arith.constant 0 : index
    %c0_9 = arith.constant 0 : index
    %7 = vector.load %arg5[%c0_8, %c0_9] : memref<1x128xf32, #tpu.memory_space<vmem>>, vector<1x128xf32>
    %8 = vector.broadcast %7 : vector<1x128xf32> to vector<8x128xf32>
    %9 = arith.addf %6, %8 : vector<8x128xf32>
    %cst_10 = arith.constant 0.000000e+00 : f32
    %10 = vector.broadcast %cst_10 : f32 to vector<8x128xf32>
    %11 = arith.maximumf %9, %10 : vector<8x128xf32>
    %c0_11 = arith.constant 0 : index
    %c0_12 = arith.constant 0 : index
    %12 = vector.load %arg6[%c0_11, %c0_12] : memref<128x128xf32, #tpu.memory_space<vmem>>, vector<128x128xf32>
    %cst_13 = arith.constant dense<0.000000e+00> : vector<8x128xf32>
    %13 = tpu.matmul %11, %12, %cst_13 {dimension_numbers = #tpu.dot_dimension_numbers<[1], [0], [0], [1], [0, 0, 1, 1], [], []>} : vector<8x128xf32>, vector<128x128xf32>, vector<8x128xf32> -> vector<8x128xf32>
    %c0_14 = arith.constant 0 : index
    %c0_15 = arith.constant 0 : index
    %14 = vector.load %arg7[%c0_14, %c0_15] : memref<1x128xf32, #tpu.memory_space<vmem>>, vector<1x128xf32>
    %15 = vector.broadcast %14 : vector<1x128xf32> to vector<8x128xf32>
    %16 = arith.addf %13, %15 : vector<8x128xf32>
    %cst_16 = arith.constant 0.000000e+00 : f32
    %17 = vector.broadcast %cst_16 : f32 to vector<8x128xf32>
    %18 = arith.maximumf %16, %17 : vector<8x128xf32>
    %c0_17 = arith.constant 0 : index
    %c0_18 = arith.constant 0 : index
    %19 = vector.load %arg8[%c0_17, %c0_18] : memref<128x1xf32, #tpu.memory_space<vmem>>, vector<128x1xf32>
    %cst_19 = arith.constant dense<0.000000e+00> : vector<8x1xf32>
    %20 = tpu.matmul %18, %19, %cst_19 {dimension_numbers = #tpu.dot_dimension_numbers<[1], [0], [0], [1], [0, 0, 1, 1], [], []>} : vector<8x128xf32>, vector<128x1xf32>, vector<8x1xf32> -> vector<8x1xf32>
    %c0_20 = arith.constant 0 : index
    %c0_21 = arith.constant 0 : index
    %21 = vector.load %arg9[%c0_20, %c0_21] : memref<1x1xf32, #tpu.memory_space<vmem>>, vector<1x1xf32>
    %22 = vector.broadcast %21 : vector<1x1xf32> to vector<8x1xf32>
    %23 = arith.addf %20, %22 : vector<8x1xf32>
    %c0_22 = arith.constant 0 : index
    %c0_23 = arith.constant 0 : index
    %24 = vector.load %arg10[%c0_22, %c0_23] : memref<8x1xf32, #tpu.memory_space<vmem>>, vector<8x1xf32>
    tpu.vector_store %arg10[%c0_22, %c0_23], %23 {strides = array<i32>} : memref<8x1xf32, #tpu.memory_space<vmem>>, vector<8x1xf32>,
    return
  }
  func.func @transform_0(%arg0: i32) -> (i32, i32) {
    %c0_i32 = arith.constant 0 : i32
    %c0_i32_0 = arith.constant 0 : i32
    return %arg0, %c0_i32 : i32, i32
  }
  func.func @transform_1(%arg0: i32) -> (i32, i32) {
    %c0_i32 = arith.constant 0 : i32
    %c0_i32_0 = arith.constant 0 : i32
    return %arg0, %c0_i32 : i32, i32
  }
  func.func @transform_2(%arg0: i32) -> (i32, i32) {
    %c0_i32 = arith.constant 0 : i32
    %c0_i32_0 = arith.constant 0 : i32
    %c0_i32_1 = arith.constant 0 : i32
    return %c0_i32, %c0_i32_0 : i32, i32
  }
  func.func @transform_3(%arg0: i32) -> (i32, i32) {
    %c0_i32 = arith.constant 0 : i32
    %c0_i32_0 = arith.constant 0 : i32
    %c0_i32_1 = arith.constant 0 : i32
    return %c0_i32, %c0_i32_0 : i32, i32
  }
  func.func @transform_4(%arg0: i32) -> (i32, i32) {
    %c0_i32 = arith.constant 0 : i32
    %c0_i32_0 = arith.constant 0 : i32
    %c0_i32_1 = arith.constant 0 : i32
    return %c0_i32, %c0_i32_0 : i32, i32
  }
  func.func @transform_5(%arg0: i32) -> (i32, i32) {
    %c0_i32 = arith.constant 0 : i32
    %c0_i32_0 = arith.constant 0 : i32
    %c0_i32_1 = arith.constant 0 : i32
    return %c0_i32, %c0_i32_0 : i32, i32
  }
  func.func @transform_6(%arg0: i32) -> (i32, i32) {
    %c0_i32 = arith.constant 0 : i32
    %c0_i32_0 = arith.constant 0 : i32
    %c0_i32_1 = arith.constant 0 : i32
    return %c0_i32, %c0_i32_0 : i32, i32
  }
  func.func @transform_7(%arg0: i32) -> (i32, i32) {
    %c0_i32 = arith.constant 0 : i32
    %c0_i32_0 = arith.constant 0 : i32
    %c0_i32_1 = arith.constant 0 : i32
    return %c0_i32, %c0_i32_0 : i32, i32
  }
  func.func @transform_8(%arg0: i32) -> (i32, i32) {
    %c0_i32 = arith.constant 0 : i32
    %c0_i32_0 = arith.constant 0 : i32
    %c0_i32_1 = arith.constant 0 : i32
    return %c0_i32, %c0_i32_0 : i32, i32
  }
  func.func @transform_9(%arg0: i32) -> (i32, i32) {
    %c0_i32 = arith.constant 0 : i32
    %c0_i32_0 = arith.constant 0 : i32
    return %arg0, %c0_i32 : i32, i32
  }
}

</mosaic_0001>

<llo_original>
// kernel: critic_forward.1
$region0: #{critic_forward.1}
  #allocation0 [shape = 'u32[]', space=smem, size = 0x4, offset = 0x4, fixed_abs, tag = 'smem constant byte address 0x4 - core index']
  #allocation1 [shape = 'u32[144,128]{1,0:T(1,128)}', space=vmem, size = 0x12000, scoped, tag = 'internal scratch']
  #allocation2 [shape = 'f32[1,1]{1,0:T(1,128)S(1)}', space=vmem, size = 0x200, scoped, tag = 'scoped memory for critic_forward.1']
  %s0 = inlined_call_operand.vmem [shape: f32[8,16], index: 0, kind: input, shape index: {}]
  %s1 = inlined_call_operand.vmem [shape: f32[8,4], index: 1, kind: input, shape index: {}]
  %s2 = inlined_call_operand.vmem [shape: f32[16,128], index: 2, kind: input, shape index: {}]
  %s3 = inlined_call_operand.vmem [shape: f32[4,128], index: 3, kind: input, shape index: {}]
  %s4 = inlined_call_operand.vmem [shape: f32[1,128], index: 4, kind: input, shape index: {}]
  %s5 = inlined_call_operand.vmem [shape: f32[128,128], index: 5, kind: input, shape index: {}]
  %s6 = inlined_call_operand.vmem [shape: f32[1,128], index: 6, kind: input, shape index: {}]
  %s7 = inlined_call_operand.vmem [shape: f32[128,1], index: 7, kind: input, shape index: {}]
  %s8 = inlined_call_operand.<no memory space> [shape: f32[1,1], index: 8, kind: input, shape index: {}]
  %s9 = inlined_call_operand.vmem [shape: f32[8,1], index: 9, kind: output, shape index: {}]
  %s10 = sld [smem:[#allocation0]]
  $region46: #{critic_forward.1} parent=0
    _
  %s12 = ssub.s32 1, %s10
  %s13 = scalar_select 0, %s12, %s10
  %v14 = vstv %s8
  %15 = vst [vmem:[#allocation2] sm:$0x1] %v14
  // Predicated region
  $region2: #{critic_forward.1} parent=0 // pred_check
    _
  $region3: #{critic_forward.1} parent=0 // pred_check_branch
    %17 = sbr.rel (0) target = $region5
  $region4: #{critic_forward.1} parent=0 // pred_region
    _
  $region5: #{critic_forward.1} parent=0 // pred_fallthru
    _
  // Predicated region
  $region6: #{critic_forward.1} parent=0 // pred_check
    _
  $region7: #{critic_forward.1} parent=0 // pred_check_branch
    %19 = sbr.rel (0) target = $region9
  $region8: #{critic_forward.1} parent=0 // pred_region
    _
  $region9: #{critic_forward.1} parent=0 // pred_fallthru
    _
  // Predicated region
  $region10: #{critic_forward.1} parent=0 // pred_check
    _
  $region11: #{critic_forward.1} parent=0 // pred_check_branch
    %21 = sbr.rel (0) target = $region13
  $region12: #{critic_forward.1} parent=0 // pred_region
    _
  $region13: #{critic_forward.1} parent=0 // pred_fallthru
    _
  // Predicated region
  $region14: #{critic_forward.1} parent=0 // pred_check
    _
  $region15: #{critic_forward.1} parent=0 // pred_check_branch
    %23 = sbr.rel (0) target = $region17
  $region16: #{critic_forward.1} parent=0 // pred_region
    _
  $region17: #{critic_forward.1} parent=0 // pred_fallthru
    _
  // Predicated region
  $region18: #{critic_forward.1} parent=0 // pred_check
    _
  $region19: #{critic_forward.1} parent=0 // pred_check_branch
    %25 = sbr.rel (0) target = $region21
  $region20: #{critic_forward.1} parent=0 // pred_region
    _
  $region21: #{critic_forward.1} parent=0 // pred_fallthru
    _
  // Predicated region
  $region22: #{critic_forward.1} parent=0 // pred_check
    _
  $region23: #{critic_forward.1} parent=0 // pred_check_branch
    %27 = sbr.rel (0) target = $region25
  $region24: #{critic_forward.1} parent=0 // pred_region
    _
  $region25: #{critic_forward.1} parent=0 // pred_fallthru
    _
  // Predicated region
  $region26: #{critic_forward.1} parent=0 // pred_check
    _
  $region27: #{critic_forward.1} parent=0 // pred_check_branch
    %29 = sbr.rel (0) target = $region29
  $region28: #{critic_forward.1} parent=0 // pred_region
    _
  $region29: #{critic_forward.1} parent=0 // pred_fallthru
    _
  // Predicated region
  $region30: #{critic_forward.1} parent=0 // pred_check
    _
  $region31: #{critic_forward.1} parent=0 // pred_check_branch
    %31 = sbr.rel (0) target = $region33
  $region32: #{critic_forward.1} parent=0 // pred_region
    _
  $region33: #{critic_forward.1} parent=0 // pred_fallthru
    _
  // Predicated region
  $region34: #{critic_forward.1} parent=0 // pred_check
    _
  $region35: #{critic_forward.1} parent=0 // pred_check_branch
    %33 = sbr.rel (0) target = $region37
  $region36: #{critic_forward.1} parent=0 // pred_region
    _
  $region37: #{critic_forward.1} parent=0 // pred_fallthru
    _
  %v34 = vld [vmem:[%s0] sm:$0xff]
  %v35 = vld [vmem:[%s2] sm:$0xff]
  %v36 = vld [vmem:[%s2 + $0x8] sm:$0xff]
  %v37 = vld [vmem:[%s1] sm:$0xff]
  %v38 = vld [vmem:[%s3] sm:$0xf]
  %vm39 = vcmask 31744
  %v41 = vsel %vm39, %v37, 0
  %vm43 = vcmask 1043456
  %v45 = vsel %vm43, %v38, 0
  %47 = vmatprep.subr.mxu0 0.0
  %48 = vmatpush1.msra.mxu0 %v45
  %49 = vmatprep.subr.mxu0 0.0
  %50 = vmatpush1.msra.mxu0 0.0
  %51 = vmatprep.subr.mxu0 0.0
  %52 = vmatpush1.msra.mxu0 0.0
  %53 = vmatprep.subr.mxu0 0.0
  %54 = vmatpush1.msra.mxu0 0.0
  %55 = vmatprep.subr.mxu0 0.0
  %56 = vmatpush1.msra.mxu0 0.0
  %57 = vmatprep.subr.mxu0 0.0
  %58 = vmatpush1.msra.mxu0 0.0
  %59 = vmatprep.subr.mxu0 0.0
  %60 = vmatpush1.msra.mxu0 0.0
  %61 = vmatprep.subr.mxu0 0.0
  %62 = vmatpush1.msra.mxu0 0.0
  %63 = vmatprep.subr.mxu0 0.0
  %64 = vmatpush1.msra.mxu0 0.0
  %65 = vmatprep.subr.mxu0 0.0
  %66 = vmatpush1.msra.mxu0 0.0
  %67 = vmatprep.subr.mxu0 0.0
  %68 = vmatpush1.msra.mxu0 0.0
  %69 = vmatprep.subr.mxu0 0.0
  %70 = vmatpush1.msra.mxu0 0.0
  %71 = vmatprep.subr.mxu0 0.0
  %72 = vmatpush1.msra.mxu0 0.0
  %73 = vmatprep.subr.mxu0 0.0
  %74 = vmatpush1.msra.mxu0 0.0
  %75 = vmatprep.subr.mxu0 0.0
  %76 = vmatpush1.msra.mxu0 0.0
  %77 = vmatprep.subr.mxu0 0.0
  %78 = vmatpush1.msra.mxu0 0.0
  %79 = vmatprep.subr.mxu0 0.0
  %80 = vmatpush1.msra.mxu0 0.0
  %81 = vmatprep.subr.mxu0 0.0
  %82 = vmatpush1.msra.mxu0 0.0
  %83 = vmatprep.subr.mxu0 0.0
  %84 = vmatpush1.msra.mxu0 0.0
  %85 = vmatprep.subr.mxu0 0.0
  %86 = vmatpush1.msra.mxu0 0.0
  %87 = vmatprep.subr.mxu0 0.0
  %88 = vmatpush1.msra.mxu0 0.0
  %89 = vmatprep.subr.mxu0 0.0
  %90 = vmatpush1.msra.mxu0 0.0
  %91 = vmatprep.subr.mxu0 0.0
  %92 = vmatpush1.msra.mxu0 0.0
  %93 = vmatprep.subr.mxu0 0.0
  %94 = vmatpush1.msra.mxu0 0.0
  %95 = vmatprep.subr.mxu0 0.0
  %96 = vmatpush1.msra.mxu0 0.0
  %97 = vmatprep.subr.mxu0 0.0
  %98 = vmatpush1.msra.mxu0 0.0
  %99 = vmatprep.subr.mxu0 0.0
  %100 = vmatpush1.msra.mxu0 0.0
  %101 = vmatprep.subr.mxu0 0.0
  %102 = vmatpush1.msra.mxu0 0.0
  %103 = vmatprep.subr.mxu0 0.0
  %104 = vmatpush1.msra.mxu0 0.0
  %105 = vmatprep.subr.mxu0 0.0
  %106 = vmatpush1.msra.mxu0 0.0
  %107 = vmatprep.subr.mxu0 0.0
  %108 = vmatpush1.msra.mxu0 0.0
  %109 = vmatprep.subr.mxu0 0.0
  %110 = vmatpush1.msra.mxu0 0.0
  %111 = vmatprep.mubr.f32.mxu0 0.0
  %112 = vmatmul.mubr.f32.gmra.mrb[0].mxu0 %v41
  %v113 = vpop.f32.mrb[0].mxu0
  %v114 = vadd.f32 0.0, %v113
  %v115 = vpop.f32.mrb[0].mxu0
  %116 = vdwg.mxu0
  %vm117 = vcmask 130048
  %v119 = vsel %vm117, %v34, 0
  %121 = vmatprep.subr.mxu0 0.0
  %122 = vmatpush1.msra.mxu0 %v35
  %123 = vmatprep.subr.mxu0 0.0
  %124 = vmatpush1.msra.mxu0 %v36
  %125 = vmatprep.subr.mxu0 0.0
  %126 = vmatpush1.msra.mxu0 0.0
  %127 = vmatprep.subr.mxu0 0.0
  %128 = vmatpush1.msra.mxu0 0.0
  %129 = vmatprep.subr.mxu0 0.0
  %130 = vmatpush1.msra.mxu0 0.0
  %131 = vmatprep.subr.mxu0 0.0
  %132 = vmatpush1.msra.mxu0 0.0
  %133 = vmatprep.subr.mxu0 0.0
  %134 = vmatpush1.msra.mxu0 0.0
  %135 = vmatprep.subr.mxu0 0.0
  %136 = vmatpush1.msra.mxu0 0.0
  %137 = vmatprep.subr.mxu0 0.0
  %138 = vmatpush1.msra.mxu0 0.0
  %139 = vmatprep.subr.mxu0 0.0
  %140 = vmatpush1.msra.mxu0 0.0
  %141 = vmatprep.subr.mxu0 0.0
  %142 = vmatpush1.msra.mxu0 0.0
  %143 = vmatprep.subr.mxu0 0.0
  %144 = vmatpush1.msra.mxu0 0.0
  %145 = vmatprep.subr.mxu0 0.0
  %146 = vmatpush1.msra.mxu0 0.0
  %147 = vmatprep.subr.mxu0 0.0
  %148 = vmatpush1.msra.mxu0 0.0
  %149 = vmatprep.subr.mxu0 0.0
  %150 = vmatpush1.msra.mxu0 0.0
  %151 = vmatprep.subr.mxu0 0.0
  %152 = vmatpush1.msra.mxu0 0.0
  %153 = vmatprep.subr.mxu0 0.0
  %154 = vmatpush1.msra.mxu0 0.0
  %155 = vmatprep.subr.mxu0 0.0
  %156 = vmatpush1.msra.mxu0 0.0
  %157 = vmatprep.subr.mxu0 0.0
  %158 = vmatpush1.msra.mxu0 0.0
  %159 = vmatprep.subr.mxu0 0.0
  %160 = vmatpush1.msra.mxu0 0.0
  %161 = vmatprep.subr.mxu0 0.0
  %162 = vmatpush1.msra.mxu0 0.0
  %163 = vmatprep.subr.mxu0 0.0
  %164 = vmatpush1.msra.mxu0 0.0
  %165 = vmatprep.subr.mxu0 0.0
  %166 = vmatpush1.msra.mxu0 0.0
  %167 = vmatprep.subr.mxu0 0.0
  %168 = vmatpush1.msra.mxu0 0.0
  %169 = vmatprep.subr.mxu0 0.0
  %170 = vmatpush1.msra.mxu0 0.0
  %171 = vmatprep.subr.mxu0 0.0
  %172 = vmatpush1.msra.mxu0 0.0
  %173 = vmatprep.subr.mxu0 0.0
  %174 = vmatpush1.msra.mxu0 0.0
  %175 = vmatprep.subr.mxu0 0.0
  %176 = vmatpush1.msra.mxu0 0.0
  %177 = vmatprep.subr.mxu0 0.0
  %178 = vmatpush1.msra.mxu0 0.0
  %179 = vmatprep.subr.mxu0 0.0
  %180 = vmatpush1.msra.mxu0 0.0
  %181 = vmatprep.subr.mxu0 0.0
  %182 = vmatpush1.msra.mxu0 0.0
  %183 = vmatprep.subr.mxu0 0.0
  %184 = vmatpush1.msra.mxu0 0.0
  %185 = vmatprep.mubr.f32.mxu0 0.0
  %186 = vmatmul.mubr.f32.gmra.mrb[0].mxu0 %v119
  %v187 = vpop.f32.mrb[0].mxu0
  %v188 = vadd.f32 %v114, %v187
  %v189 = vpop.f32.mrb[0].mxu0
  %190 = vdwg.mxu0
  %v191 = vld [vmem:[%s4] sm:$0x1]
  %v193 = vlaneseq
  %v194 = vshrl.u32 %v193, 7
  %v195 = vsub.s32 0, %v194
  %v196 = vrot.slane %v191, %v195
  %v198 = vadd.f32 %v188, %v196
  %v199 = vmax.f32 %v198, 0.0
  %v200 = vld [vmem:[%s5] sm:$0xff]
  %v201 = vld [vmem:[%s5 + $0x8] sm:$0xff]
  %v202 = vld [vmem:[%s5 + $0x10] sm:$0xff]
  %v203 = vld [vmem:[%s5 + $0x18] sm:$0xff]
  %v204 = vld [vmem:[%s5 + $0x20] sm:$0xff]
  %v205 = vld [vmem:[%s5 + $0x28] sm:$0xff]
  %v206 = vld [vmem:[%s5 + $0x30] sm:$0xff]
  %v207 = vld [vmem:[%s5 + $0x38] sm:$0xff]
  %v208 = vld [vmem:[%s5 + $0x40] sm:$0xff]
  %v209 = vld [vmem:[%s5 + $0x48] sm:$0xff]
  %v210 = vld [vmem:[%s5 + $0x50] sm:$0xff]
  %v211 = vld [vmem:[%s5 + $0x58] sm:$0xff]
  %v212 = vld [vmem:[%s5 + $0x60] sm:$0xff]
  %v213 = vld [vmem:[%s5 + $0x68] sm:$0xff]
  %v214 = vld [vmem:[%s5 + $0x70] sm:$0xff]
  %v215 = vld [vmem:[%s5 + $0x78] sm:$0xff]
  %v216 = vld [vmem:[%s6] sm:$0x1]
  %v218 = vlaneseq
  %v219 = vshrl.u32 %v218, 7
  %v220 = vsub.s32 0, %v219
  %v221 = vrot.slane %v216, %v220
  %223 = vmatprep.subr.mxu0 0.0
  %224 = vmatpush1.msra.mxu0 %v200
  %225 = vmatprep.subr.mxu0 0.0
  %226 = vmatpush1.msra.mxu0 %v201
  %227 = vmatprep.subr.mxu0 0.0
  %228 = vmatpush1.msra.mxu0 %v202
  %229 = vmatprep.subr.mxu0 0.0
  %230 = vmatpush1.msra.mxu0 %v203
  %231 = vmatprep.subr.mxu0 0.0
  %232 = vmatpush1.msra.mxu0 %v204
  %233 = vmatprep.subr.mxu0 0.0
  %234 = vmatpush1.msra.mxu0 %v205
  %235 = vmatprep.subr.mxu0 0.0
  %236 = vmatpush1.msra.mxu0 %v206
  %237 = vmatprep.subr.mxu0 0.0
  %238 = vmatpush1.msra.mxu0 %v207
  %239 = vmatprep.subr.mxu0 0.0
  %240 = vmatpush1.msra.mxu0 %v208
  %241 = vmatprep.subr.mxu0 0.0
  %242 = vmatpush1.msra.mxu0 %v209
  %243 = vmatprep.subr.mxu0 0.0
  %244 = vmatpush1.msra.mxu0 %v210
  %245 = vmatprep.subr.mxu0 0.0
  %246 = vmatpush1.msra.mxu0 %v211
  %247 = vmatprep.subr.mxu0 0.0
  %248 = vmatpush1.msra.mxu0 %v212
  %249 = vmatprep.subr.mxu0 0.0
  %250 = vmatpush1.msra.mxu0 %v213
  %251 = vmatprep.subr.mxu0 0.0
  %252 = vmatpush1.msra.mxu0 %v214
  %253 = vmatprep.subr.mxu0 0.0
  %254 = vmatpush1.msra.mxu0 %v215
  %255 = vmatprep.subr.mxu0 0.0
  %256 = vmatpush1.msra.mxu0 0.0
  %257 = vmatprep.subr.mxu0 0.0
  %258 = vmatpush1.msra.mxu0 0.0
  %259 = vmatprep.subr.mxu0 0.0
  %260 = vmatpush1.msra.mxu0 0.0
  %261 = vmatprep.subr.mxu0 0.0
  %262 = vmatpush1.msra.mxu0 0.0
  %263 = vmatprep.subr.mxu0 0.0
  %264 = vmatpush1.msra.mxu0 0.0
  %265 = vmatprep.subr.mxu0 0.0
  %266 = vmatpush1.msra.mxu0 0.0
  %267 = vmatprep.subr.mxu0 0.0
  %268 = vmatpush1.msra.mxu0 0.0
  %269 = vmatprep.subr.mxu0 0.0
  %270 = vmatpush1.msra.mxu0 0.0
  %271 = vmatprep.subr.mxu0 0.0
  %272 = vmatpush1.msra.mxu0 0.0
  %273 = vmatprep.subr.mxu0 0.0
  %274 = vmatpush1.msra.mxu0 0.0
  %275 = vmatprep.subr.mxu0 0.0
  %276 = vmatpush1.msra.mxu0 0.0
  %277 = vmatprep.subr.mxu0 0.0
  %278 = vmatpush1.msra.mxu0 0.0
  %279 = vmatprep.subr.mxu0 0.0
  %280 = vmatpush1.msra.mxu0 0.0
  %281 = vmatprep.subr.mxu0 0.0
  %282 = vmatpush1.msra.mxu0 0.0
  %283 = vmatprep.subr.mxu0 0.0
  %284 = vmatpush1.msra.mxu0 0.0
  %285 = vmatprep.subr.mxu0 0.0
  %286 = vmatpush1.msra.mxu0 0.0
  %287 = vmatprep.mubr.f32.mxu0 0.0
  %288 = vmatmul.mubr.f32.gmra.mrb[0].mxu0 %v199
  %v289 = vpop.f32.mrb[0].mxu0
  %v290 = vadd.f32 %v221, %v289
  %v291 = vpop.f32.mrb[0].mxu0
  %292 = vdwg.mxu0
  %v293 = vmax.f32 %v290, 0.0
  %v294 = vld [vmem:[%s7] sm:$0xff]
  %v295 = vld [vmem:[%s7 + $0x8] sm:$0xff]
  %v296 = vld [vmem:[%s7 + $0x10] sm:$0xff]
  %v297 = vld [vmem:[%s7 + $0x18] sm:$0xff]
  %v298 = vld [vmem:[%s7 + $0x20] sm:$0xff]
  %v299 = vld [vmem:[%s7 + $0x28] sm:$0xff]
  %v300 = vld [vmem:[%s7 + $0x30] sm:$0xff]
  %v301 = vld [vmem:[%s7 + $0x38] sm:$0xff]
  %v302 = vld [vmem:[%s7 + $0x40] sm:$0xff]
  %v303 = vld [vmem:[%s7 + $0x48] sm:$0xff]
  %v304 = vld [vmem:[%s7 + $0x50] sm:$0xff]
  %v305 = vld [vmem:[%s7 + $0x58] sm:$0xff]
  %v306 = vld [vmem:[%s7 + $0x60] sm:$0xff]
  %v307 = vld [vmem:[%s7 + $0x68] sm:$0xff]
  %v308 = vld [vmem:[%s7 + $0x70] sm:$0xff]
  %v309 = vld [vmem:[%s7 + $0x78] sm:$0xff]
  %v310 = vld [vmem:[#allocation2] sm:$0x1]
  %v312 = vlaneseq
  %v313 = vshrl.u32 %v312, 7
  %v314 = vsub.s32 0, %v313
  %v315 = vrot.slane %v310, %v314
  %317 = vmatprep.subr.mxu0 0.0
  %318 = vmatpush1.msra.mxu0 %v294
  %319 = vmatprep.subr.mxu0 0.0
  %320 = vmatpush1.msra.mxu0 %v295
  %321 = vmatprep.subr.mxu0 0.0
  %322 = vmatpush1.msra.mxu0 %v296
  %323 = vmatprep.subr.mxu0 0.0
  %324 = vmatpush1.msra.mxu0 %v297
  %325 = vmatprep.subr.mxu0 0.0
  %326 = vmatpush1.msra.mxu0 %v298
  %327 = vmatprep.subr.mxu0 0.0
  %328 = vmatpush1.msra.mxu0 %v299
  %329 = vmatprep.subr.mxu0 0.0
  %330 = vmatpush1.msra.mxu0 %v300
  %331 = vmatprep.subr.mxu0 0.0
  %332 = vmatpush1.msra.mxu0 %v301
  %333 = vmatprep.subr.mxu0 0.0
  %334 = vmatpush1.msra.mxu0 %v302
  %335 = vmatprep.subr.mxu0 0.0
  %336 = vmatpush1.msra.mxu0 %v303
  %337 = vmatprep.subr.mxu0 0.0
  %338 = vmatpush1.msra.mxu0 %v304
  %339 = vmatprep.subr.mxu0 0.0
  %340 = vmatpush1.msra.mxu0 %v305
  %341 = vmatprep.subr.mxu0 0.0
  %342 = vmatpush1.msra.mxu0 %v306
  %343 = vmatprep.subr.mxu0 0.0
  %344 = vmatpush1.msra.mxu0 %v307
  %345 = vmatprep.subr.mxu0 0.0
  %346 = vmatpush1.msra.mxu0 %v308
  %347 = vmatprep.subr.mxu0 0.0
  %348 = vmatpush1.msra.mxu0 %v309
  %349 = vmatprep.subr.mxu0 0.0
  %350 = vmatpush1.msra.mxu0 0.0
  %351 = vmatprep.subr.mxu0 0.0
  %352 = vmatpush1.msra.mxu0 0.0
  %353 = vmatprep.subr.mxu0 0.0
  %354 = vmatpush1.msra.mxu0 0.0
  %355 = vmatprep.subr.mxu0 0.0
  %356 = vmatpush1.msra.mxu0 0.0
  %357 = vmatprep.subr.mxu0 0.0
  %358 = vmatpush1.msra.mxu0 0.0
  %359 = vmatprep.subr.mxu0 0.0
  %360 = vmatpush1.msra.mxu0 0.0
  %361 = vmatprep.subr.mxu0 0.0
  %362 = vmatpush1.msra.mxu0 0.0
  %363 = vmatprep.subr.mxu0 0.0
  %364 = vmatpush1.msra.mxu0 0.0
  %365 = vmatprep.subr.mxu0 0.0
  %366 = vmatpush1.msra.mxu0 0.0
  %367 = vmatprep.subr.mxu0 0.0
  %368 = vmatpush1.msra.mxu0 0.0
  %369 = vmatprep.subr.mxu0 0.0
  %370 = vmatpush1.msra.mxu0 0.0
  %371 = vmatprep.subr.mxu0 0.0
  %372 = vmatpush1.msra.mxu0 0.0
  %373 = vmatprep.subr.mxu0 0.0
  %374 = vmatpush1.msra.mxu0 0.0
  %375 = vmatprep.subr.mxu0 0.0
  %376 = vmatpush1.msra.mxu0 0.0
  %377 = vmatprep.subr.mxu0 0.0
  %378 = vmatpush1.msra.mxu0 0.0
  %379 = vmatprep.subr.mxu0 0.0
  %380 = vmatpush1.msra.mxu0 0.0
  %381 = vmatprep.mubr.f32.mxu0 0.0
  %382 = vmatmul.mubr.f32.gmra.mrb[0].mxu0 %v293
  %v383 = vpop.f32.mrb[0].mxu0
  %v384 = vadd.f32 %v315, %v383
  %v385 = vpop.f32.mrb[0].mxu0
  %386 = vdwg.mxu0
  %vm387 = vcmask 7168
  %388 = vst.msk [vmem:[%s9] sm:$0xff] %vm387, %v384
  // Predicated region
  $region38: #{critic_forward.1} parent=0 // pred_check
    _
  $region39: #{critic_forward.1} parent=0 // pred_check_branch
    %390 = sbr.rel (0) target = $region41
  $region40: #{critic_forward.1} parent=0 // pred_region
    _
  $region41: #{critic_forward.1} parent=0 // pred_fallthru
    _
  // Predicated region
  $region42: #{critic_forward.1} parent=0 // pred_check
    _
  $region43: #{critic_forward.1} parent=0 // pred_check_branch
    %392 = sbr.rel (0) target = $region45
  $region44: #{critic_forward.1} parent=0 // pred_region
    _
  $region45: #{critic_forward.1} parent=0 // pred_fallthru
    _

</llo_original>
